<compile_context>
chip_gen: v6e
topology: v6e:2x2x1
jax: 0.10.0
libtpu: 0.0.40
codegen_flags: <defaults>
</compile_context>

<pallas_src>
import functools

import jax
import jax.numpy as jnp
from jax.experimental import pallas as pl
from jax.experimental.pallas import tpu as pltpu


_T_TILE_TARGET = 2048       # kernel is per-step-overhead bound at D=32/O=10 -> big tiles
_MIN_GRID_STEPS = 4         # keep >= 2 grid steps per v7x TensorCore even when B == 1


def _vmem_capacity_bytes():
    """Physical VMEM per core (128 MiB v5e/v6e, 64 MiB v7x); conservative fallback."""
    try:
        return int(pltpu.get_tpu_info().vmem_capacity_bytes)
    except Exception:
        return 64 * 1024 * 1024


def _tile_vmem_bytes(t_tile, K, D, O_pad, in_itemsize):
    """Rough per-step VMEM: double-buffered in/out blocks + im2col scratch + weights."""
    lanes = lambda n: -(-n // 128) * 128
    subl = lambda n: -(-n // 8) * 8
    x_blk = subl(t_tile) * lanes(D) * in_itemsize
    halo_blk = 32 * lanes(D) * in_itemsize
    o_blk = subl(t_tile) * lanes(O_pad) * 4
    win = subl(t_tile) * lanes(K * D) * in_itemsize if K > 1 else 0
    wts = subl(K * D) * lanes(O_pad) * in_itemsize + 8 * lanes(O_pad) * 4
    return 2 * (x_blk + halo_blk + o_blk) + win + wts


def _choose_time_tile(T, unit, K, D, O_pad, itemsize, B, budget):
    """Largest aligned divisor of T <= target that fits the VMEM budget, preferring a
    tile count that keeps both v7x TensorCores busy and the DMA pipeline primed."""
    def fits(d):
        return _tile_vmem_bytes(d, K, D, O_pad, itemsize) <= budget

    needed_nt = max(1, -(-_MIN_GRID_STEPS // max(B, 1)))
    cands = [d for d in range(unit, min(T, _T_TILE_TARGET) + 1, unit)
             if T % d == 0 and fits(d)]
    if T <= _T_TILE_TARGET and fits(T):
        cands.append(T)                     # full-length tile is always block-shape legal
    par = [d for d in cands if T // d >= needed_nt]
    if par:
        return max(par)
    if cands:
        return max(cands)
    # TODO(synk): no sublane-aligned divisor of T fits the budget (e.g. very long prime
    # T); fall back to one full-length tile instead of supporting a remainder tile.
    return T


def _framewise_conv_kernel(*refs, kernel_size, has_halo):
    """One (batch, time-tile) grid step.

    x_ref    : (1, Tt, D)        current time tile, compute dtype (e.g. bf16)
    halo_ref : (1, halo_rows, D) first rows of the NEXT time tile (only if has_halo)
    w_ref    : (K*D, O_pad)      per-tap weights concatenated along the contraction dim
    b_ref    : (1, O_pad)        float32 bias (zero-padded past O)
    o_ref    : (1, Tt, O_pad)    float32 output logits (lane-dense if O_pad % 128 == 0)
    win_ref  : (Tt, K*D)         VMEM im2col window scratch (only if K > 1)
    """
    K = kernel_size
    i = 0
    x_ref = refs[i]; i += 1
    halo_ref = None
    if has_halo:
        halo_ref = refs[i]; i += 1
    w_ref, b_ref, o_ref = refs[i], refs[i + 1], refs[i + 2]
    win_ref = refs[i + 3] if K > 1 else None

    Tt, D = x_ref.shape[1], x_ref.shape[2]

    if K == 1:
        # Fast path: plain per-frame matmul, no window scratch, single store of o_ref.
        o_ref[0] = (jnp.dot(x_ref[0], w_ref[...], preferred_element_type=jnp.float32)
                    + b_ref[...])
        return

    # Tail rows (K-1, D): first rows of the NEXT time tile, or zeros at end of sequence
    # (the conv's right zero-padding).
    if has_halo:
        not_last = pl.program_id(1) < pl.num_programs(1) - 1
        halo = halo_ref[0, :K - 1, :]
        tail = jnp.where(not_last, halo, jnp.zeros_like(halo))
    else:
        tail = jnp.zeros((K - 1, D), x_ref.dtype)

    # Build the (Tt, K*D) im2col window: lane-column block j holds x[t + j].
    # Each column is written once as a full-row, lane-sliced store (no f32 output
    # read-modify-write passes, no full-tile pad copy).  Sublane shifts for j >= 1 are
    # done in-register (XLU) before the aligned store.
    win_ref[:, 0:D] = x_ref[0]
    for j in range(1, K):
        col_j = jnp.concatenate([x_ref[0, j:Tt, :], tail[0:j, :]], axis=0)   # (Tt, D)
        win_ref[:, j * D:(j + 1) * D] = col_j

    # Single fused matmul over the K*D contraction; bias folded into the one store.
    o_ref[0] = (jnp.dot(win_ref[...], w_ref[...], preferred_element_type=jnp.float32)
                + b_ref[...])


def prepare_conv_params(weight, bias, compute_dtype=jnp.bfloat16, lane_dense_output=True):
    """PyTorch Conv1d weight (O, D, K) -> fused matmul weight (K*D, O_pad) + bias.

    Done once, outside the jitted hot path.  If `lane_dense_output`, O is zero-padded to
    a multiple of 128 so the kernel's output stores are unmasked/lane-dense (padded
    columns produce exact zeros and are sliced off in the wrapper).
    NOTE: compute_dtype=bf16 quantizes the weights; pass jnp.float32 if exact parity
    with the PyTorch f32 Conv1d matters.
    """
    O, D, K = weight.shape
    w_cat = jnp.transpose(weight, (2, 1, 0)).reshape(K * D, O)   # tap-major contraction
    O_pad = (-(-O // 128)) * 128 if lane_dense_output else O
    b = bias
    if O_pad != O:
        w_cat = jnp.pad(w_cat, ((0, 0), (0, O_pad - O)))
        b = jnp.pad(bias, (0, O_pad - O))
    return w_cat.astype(compute_dtype), b.reshape(1, O_pad).astype(jnp.float32), O


def framewise_predictor_forward(x, w_cat, bias2, *, kernel_size, output_dim,
                                time_tile=None):
    """Pallas forward of FramewisePredictor (single-layer predictor).

    x      : (B, T, *rest) activations (bf16 or f32; not upcast here)
    w_cat  : (K*D, O_pad) fused weight (see prepare_conv_params)
    bias2  : (1, O_pad) float32 bias
    Returns (B, T, 1, output_dim) float32 logits, matching FramewisePredictor.forward.
    """
    B, T = x.shape[0], x.shape[1]
    D = 1
    for s in x.shape[2:]:
        D *= s
    K = kernel_size
    KD, O_pad = w_cat.shape
    assert KD == K * D and K >= 1, (KD, K, D)

    x_flat = x.reshape(B, T, D)
    cdtype = x_flat.dtype
    itemsize = jnp.dtype(cdtype).itemsize
    sublane = {4: 8, 2: 16, 1: 32}.get(itemsize, 8)
    halo_rows = (-(-(K - 1) // sublane)) * sublane if K > 1 else 0
    unit = halo_rows if K > 1 else sublane

    vmem_cap = _vmem_capacity_bytes()
    tile_budget = (vmem_cap * 3) // 4          # ~96 MiB on v5e/v6e, ~48 MiB on v7x

    t_tile = None
    if time_tile is not None:
        tt = int(time_tile)
        if T % tt == 0 and (tt == T or tt % unit == 0):
            t_tile = tt
        # else: invalid user tile for this shape/dtype -> fall back to auto selection.
    if t_tile is None:
        t_tile = _choose_time_tile(T, unit, K, D, O_pad, itemsize, B, tile_budget)

    assert T % t_tile == 0, (T, t_tile)
    assert t_tile >= K, (t_tile, K)
    nt = T // t_tile
    has_halo = (K > 1) and (nt > 1)

    in_specs = [pl.BlockSpec((1, t_tile, D), lambda b, t: (b, t, 0))]
    operands = [x_flat]
    if has_halo:
        blocks_per_tile = t_tile // halo_rows
        max_halo_blk = T // halo_rows - 1      # clamp at the last tile (content masked)
        in_specs.append(pl.BlockSpec(
            (1, halo_rows, D),
            lambda b, t, bpt=blocks_per_tile, mx=max_halo_blk:
                (b, jnp.minimum((t + 1) * bpt, mx), 0)))
        operands.append(x_flat)                # second, tiny (halo) view of the same array
    # Weights / bias: constant index maps -> VMEM-resident across grid steps.
    in_specs.append(pl.BlockSpec((KD, O_pad), lambda b, t: (0, 0)))
    in_specs.append(pl.BlockSpec((1, O_pad), lambda b, t: (0, 0)))
    operands += [w_cat, bias2]

    scratch_shapes = [pltpu.VMEM((t_tile, KD), cdtype)] if K > 1 else []

    tile_bytes = _tile_vmem_bytes(t_tile, K, D, O_pad, itemsize)
    vmem_limit = int(min(int(vmem_cap * 0.9), max(32 * 1024 * 1024, 2 * tile_bytes)))

    out = pl.pallas_call(
        functools.partial(_framewise_conv_kernel, kernel_size=K, has_halo=has_halo),
        out_shape=jax.ShapeDtypeStruct((B, T, O_pad), jnp.float32),
        grid=(B, nt),
        in_specs=in_specs,
        out_specs=pl.BlockSpec((1, t_tile, O_pad), lambda b, t: (b, t, 0)),
        scratch_shapes=scratch_shapes,
        compiler_params=pltpu.CompilerParams(
            # Both grid axes are independent -> shards across v7x's 2 TensorCores even
            # when B == 1; free on single-TC v5e/v6e.
            dimension_semantics=("parallel", "parallel"),
            vmem_limit_bytes=vmem_limit),
    )(*operands)

    if O_pad != output_dim:
        out = out[:, :, :output_dim]           # drop lane-padding columns (exact zeros)
    return out[:, :, None, :]                  # (B, T, 1, O)


def _reference_forward(x, w_cat, bias2, kernel_size, output_dim):
    """Pure-JAX reference mirroring the PyTorch module (explicit right pad + conv)."""
    B, T = x.shape[0], x.shape[1]
    K = kernel_size
    KD, O_pad = w_cat.shape
    D = KD // K
    xf = x.reshape(B, T, D).astype(jnp.float32)
    wf = w_cat.astype(jnp.float32).reshape(K, D, O_pad)
    xp = jnp.pad(xf, ((0, 0), (0, K - 1), (0, 0)))             # (B, T+K-1, D)
    out = jnp.zeros((B, T, O_pad), jnp.float32) + bias2.astype(jnp.float32)[None]
    for j in range(K):
        out = out + jnp.einsum('btd,do->bto', xp[:, j:j + T, :], wf[j])
    return out[:, :, :output_dim][:, :, None, :]


if __name__ == "__main__":
    key = jax.random.PRNGKey(0)
    k_w, k_b, k_x1, k_x2, k_x3, k_w1, k_b1, k_x4 = jax.random.split(key, 8)

    O, K = 10, 3                       # output_dim (classes), aggreg (kernel_size)
    H, C = 2, 16                       # trailing feature dims -> input_dim D = 32
    D = H * C

    # PyTorch Conv1d layout weights (O, D, K).
    weight = jax.random.normal(k_w, (O, D, K), dtype=jnp.float32) * 0.1
    bias = jax.random.normal(k_b, (O,), dtype=jnp.float32) * 0.1

    def run_case(x, w, b, ksize, time_tile=None, lane_dense=True):
        w_cat, b2, o_dim = prepare_conv_params(w, b, compute_dtype=x.dtype,
                                               lane_dense_output=lane_dense)
        fwd = jax.jit(functools.partial(framewise_predictor_forward,
                                        kernel_size=ksize, output_dim=o_dim,
                                        time_tile=time_tile))
        out = jax.block_until_ready(fwd(x, w_cat, b2))
        ref = _reference_forward(x, w_cat, b2, ksize, o_dim)
        assert out.shape == ref.shape, (out.shape, ref.shape)
        err = jnp.max(jnp.abs(out - ref))
        assert jnp.allclose(out, ref, atol=2e-3, rtol=2e-3), f"mismatch, max abs err {err}"
        return out

    # Case 1: module-like small shape (single time tile, zero-tail path).  x: (2, 8, 2, 16).
    x1 = jax.random.normal(k_x1, (2, 8, H, C), jnp.float32).astype(jnp.bfloat16)
    assert run_case(x1, weight, bias, K).shape == (2, 8, 1, O)

    # Case 2: forced small time tile -> exercises the next-tile halo path.  x: (2, 64, 2, 16).
    x2 = jax.random.normal(k_x2, (2, 64, H, C), jnp.float32).astype(jnp.bfloat16)
    assert run_case(x2, weight, bias, K, time_tile=16).shape == (2, 64, 1, O)

    # Case 3: B == 1 auto tiling -> >= 4 grid steps (v7x megacore floor) + halo path.
    x3 = jax.random.normal(k_x3, (1, 256, H, C), jnp.float32).astype(jnp.bfloat16)
    assert run_case(x3, weight, bias, K).shape == (1, 256, 1, O)

    # Case 4: K == 1 fast path (no im2col scratch), f32 activations, narrow (O=10) output.
    w1 = jax.random.normal(k_w1, (O, D, 1), dtype=jnp.float32) * 0.1
    b1 = jax.random.normal(k_b1, (O,), dtype=jnp.float32) * 0.1
    x4 = jax.random.normal(k_x4, (2, 32, H, C), jnp.float32)
    assert run_case(x4, w1, b1, 1, lane_dense=False).shape == (2, 32, 1, O)

    # TODO(synk): use_two_layer_predictor=True branch (Conv1d->BatchNorm1d->ReLU->Conv1d)
    # not implemented; default single-layer predictor only.
    print("KERNEL_OK")
</pallas_src>

<mosaic_0001>
module attributes {stable_mosaic.version = 11 : i64} {
  func.func @_framewise_conv_kernel(%arg0: i32, %arg1: i32, %arg2: memref<1x8x32xbf16, #tpu.memory_space<vmem>>, %arg3: memref<96x128xbf16, #tpu.memory_space<vmem>>, %arg4: memref<1x128xf32, #tpu.memory_space<vmem>>, %arg5: memref<1x8x128xf32, #tpu.memory_space<vmem>>, %arg6: memref<8x96xbf16, #tpu.memory_space<vmem>>) attributes {dimension_semantics = [#tpu.dimension_semantics<parallel>, #tpu.dimension_semantics<parallel>], iteration_bounds = array<i64: 2, 1>, scalar_prefetch = 0 : i64, scratch_operands = 1 : i64, tpu.core_type = #tpu.core_type<tc>, window_params = [{transform_indices = @transform_0, window_bounds = array<i64: 1, 8, 32>}, {pipeline_mode = #tpu.pipeline_mode<synchronous>, transform_indices = @transform_1, window_bounds = array<i64: 96, 128>}, {pipeline_mode = #tpu.pipeline_mode<synchronous>, transform_indices = @transform_2, window_bounds = array<i64: 1, 128>}, {transform_indices = @transform_3, window_bounds = array<i64: 1, 8, 128>}]} {
    %cst = arith.constant 0.000000e+00 : bf16
    %0 = vector.broadcast %cst : bf16 to vector<2x32xbf16>
    %c0 = arith.constant 0 : index
    %c0_0 = arith.constant 0 : index
    %c0_1 = arith.constant 0 : index
    %1 = vector.load %arg2[%c0, %c0_0, %c0_1] : memref<1x8x32xbf16, #tpu.memory_space<vmem>>, vector<1x8x32xbf16>
    %2 = vector.shape_cast %1 : vector<1x8x32xbf16> to vector<8x32xbf16>
    %c0_2 = arith.constant 0 : index
    %c0_3 = arith.constant 0 : index
    %3 = vector.load %arg6[%c0_2, %c0_3] : memref<8x96xbf16, #tpu.memory_space<vmem>>, vector<8x32xbf16>
    tpu.vector_store %arg6[%c0_2, %c0_3], %2 {strides = array<i32>} : memref<8x96xbf16, #tpu.memory_space<vmem>>, vector<8x32xbf16>,
    %c0_4 = arith.constant 0 : index
    %c1 = arith.constant 1 : index
    %c0_5 = arith.constant 0 : index
    %4 = vector.load %arg2[%c0_4, %c1, %c0_5] : memref<1x8x32xbf16, #tpu.memory_space<vmem>>, vector<1x7x32xbf16>
    %5 = vector.shape_cast %4 : vector<1x7x32xbf16> to vector<7x32xbf16>
    %6 = vector.extract_strided_slice %0 {offsets = [0, 0], sizes = [1, 32], strides = [1, 1]} : vector<2x32xbf16> to vector<1x32xbf16>
    %7 = tpu.concatenate %5, %6 in 0 : vector<7x32xbf16>, vector<1x32xbf16> -> vector<8x32xbf16>
    %c0_6 = arith.constant 0 : index
    %c32 = arith.constant 32 : index
    %8 = vector.load %arg6[%c0_6, %c32] : memref<8x96xbf16, #tpu.memory_space<vmem>>, vector<8x32xbf16>
    tpu.vector_store %arg6[%c0_6, %c32], %7 {strides = array<i32>} : memref<8x96xbf16, #tpu.memory_space<vmem>>, vector<8x32xbf16>,
    %c0_7 = arith.constant 0 : index
    %c2 = arith.constant 2 : index
    %c0_8 = arith.constant 0 : index
    %9 = vector.load %arg2[%c0_7, %c2, %c0_8] : memref<1x8x32xbf16, #tpu.memory_space<vmem>>, vector<1x6x32xbf16>
    %10 = vector.shape_cast %9 : vector<1x6x32xbf16> to vector<6x32xbf16>
    %11 = tpu.concatenate %10, %0 in 0 : vector<6x32xbf16>, vector<2x32xbf16> -> vector<8x32xbf16>
    %c0_9 = arith.constant 0 : index
    %c64 = arith.constant 64 : index
    %12 = vector.load %arg6[%c0_9, %c64] : memref<8x96xbf16, #tpu.memory_space<vmem>>, vector<8x32xbf16>
    tpu.vector_store %arg6[%c0_9, %c64], %11 {strides = array<i32>} : memref<8x96xbf16, #tpu.memory_space<vmem>>, vector<8x32xbf16>,
    %c0_10 = arith.constant 0 : index
    %c0_11 = arith.constant 0 : index
    %13 = vector.load %arg6[%c0_10, %c0_11] : memref<8x96xbf16, #tpu.memory_space<vmem>>, vector<8x96xbf16>
    %c0_12 = arith.constant 0 : index
    %c0_13 = arith.constant 0 : index
    %14 = vector.load %arg3[%c0_12, %c0_13] : memref<96x128xbf16, #tpu.memory_space<vmem>>, vector<96x128xbf16>
    %cst_14 = arith.constant dense<0.000000e+00> : vector<8x128xf32>
    %15 = tpu.matmul %13, %14, %cst_14 {dimension_numbers = #tpu.dot_dimension_numbers<[1], [0], [0], [1], [0, 0, 1, 1], [], []>} : vector<8x96xbf16>, vector<96x128xbf16>, vector<8x128xf32> -> vector<8x128xf32>
    %c0_15 = arith.constant 0 : index
    %c0_16 = arith.constant 0 : index
    %16 = vector.load %arg4[%c0_15, %c0_16] : memref<1x128xf32, #tpu.memory_space<vmem>>, vector<1x128xf32>
    %17 = vector.broadcast %16 : vector<1x128xf32> to vector<8x128xf32>
    %18 = arith.addf %15, %17 : vector<8x128xf32>
    %c0_17 = arith.constant 0 : index
    %c0_18 = arith.constant 0 : index
    %c0_19 = arith.constant 0 : index
    %19 = vector.load %arg5[%c0_17, %c0_18, %c0_19] : memref<1x8x128xf32, #tpu.memory_space<vmem>>, vector<1x8x128xf32>
    %20 = vector.shape_cast %19 : vector<1x8x128xf32> to vector<8x128xf32>
    %21 = vector.shape_cast %18 : vector<8x128xf32> to vector<1x8x128xf32>
    tpu.vector_store %arg5[%c0_17, %c0_18, %c0_19], %21 {strides = array<i32>} : memref<1x8x128xf32, #tpu.memory_space<vmem>>, vector<1x8x128xf32>,
    return
  }
  func.func @transform_0(%arg0: i32, %arg1: i32) -> (i32, i32, i32) {
    %c0_i32 = arith.constant 0 : i32
    %c0_i32_0 = arith.constant 0 : i32
    return %arg0, %arg1, %c0_i32 : i32, i32, i32
  }
  func.func @transform_1(%arg0: i32, %arg1: i32) -> (i32, i32) {
    %c0_i32 = arith.constant 0 : i32
    %c0_i32_0 = arith.constant 0 : i32
    %c0_i32_1 = arith.constant 0 : i32
    return %c0_i32, %c0_i32_0 : i32, i32
  }
  func.func @transform_2(%arg0: i32, %arg1: i32) -> (i32, i32) {
    %c0_i32 = arith.constant 0 : i32
    %c0_i32_0 = arith.constant 0 : i32
    %c0_i32_1 = arith.constant 0 : i32
    return %c0_i32, %c0_i32_0 : i32, i32
  }
  func.func @transform_3(%arg0: i32, %arg1: i32) -> (i32, i32, i32) {
    %c0_i32 = arith.constant 0 : i32
    %c0_i32_0 = arith.constant 0 : i32
    return %arg0, %arg1, %c0_i32 : i32, i32, i32
  }
}

</mosaic_0001>

<llo_original>
// kernel: framewise_predictor_forward.1
$region0: #{framewise_predictor_forward.1}
  #allocation0 [shape = 'u32[]', space=smem, size = 0x4, offset = 0x4, fixed_abs, tag = 'smem constant byte address 0x4 - core index']
  #allocation1 [shape = 'u32[144,128]{1,0:T(1,128)}', space=vmem, size = 0x12000, scoped, tag = 'internal scratch']
  #allocation2 [shape = 'bf16[8,96]{1,0:T(8,128)(2,1)}', space=vmem, size = 0x800, scoped, tag = 'scratch operand']
  %s0 = inlined_call_operand.vmem [shape: bf16[2,8,32], index: 0, kind: input, shape index: {}]
  %s1 = inlined_call_operand.hbm [shape: bf16[96,128], index: 1, kind: input, shape index: {}]
  %s2 = inlined_call_operand.vmem [shape: f32[1,128], index: 2, kind: input, shape index: {}]
  %s3 = inlined_call_operand.hbm [shape: f32[2,8,128], index: 3, kind: output, shape index: {}]
  %s4 = sld [smem:[#allocation0]]
  $region49: #{framewise_predictor_forward.1} parent=0
    _
  %s6 = ssub.s32 1, %s4
  %s7 = scalar_select 0, %s6, %s4
  $region1: #{framewise_predictor_forward.1} parent=0
    #allocation3 [shape = 'u8[24576]{0}', space=vmem, size = 0x6000, scoped, tag = 'input window, operand 1, single buffered']
    #allocation4 [shape = 's32[2]{0}', space=sflag, size = 0x8, scoped, tag = 'scoped memory for framewise_predictor_forward.1']
    #allocation5 [shape = 's32[2]{0}', space=sflag, size = 0x8, scoped, tag = 'scoped memory for framewise_predictor_forward.1']
    #allocation6 [shape = 'u8[8192]{0}', space=vmem, size = 0x2000, scoped, tag = 'output window, operand 0']
    %8 = vsyncpa [#allocation4], 0
    %9 = vsyncpa [#allocation5], 0
    %s10 = scalar_lea.sflag [#allocation5], 1
    %11 = vsyncpa %s10, 0
    loop: start=0, step=1, limit=4
    $region2: #{framewise_predictor_forward.1} parent=1 // loop_pre_header
      _
    $region3: #{framewise_predictor_forward.1} parent=1 // loop_header
      %s13 = sphi 0, %s17
      %p14 = scmp.ge.s32.totalorder %s13, 4
      %s20 = sphi 0, %s32
      %s21 = sphi 0, %s28
      %s22 = sphi 0, %s20
      %s23 = sphi 0, %s21
      %s24 = sphi 0, %s22
      %s25 = sphi 0, %s23
      %s37 = sphi 0, %s39
      %s40 = sphi 0, %s37
      %s41 = sphi 0, %s40
      %s57 = sphi 0, %s41
      %s61 = sphi 0, %s61
      %s63 = sphi 0, %s61
      %s64 = sphi 0, %s63
      %s78 = sphi 0, %s64
      %s82 = sphi 0, %s82
      %s84 = sphi 0, %s82
      %s85 = sphi 0, %s84
      %s99 = sphi 0, %s85
      %s107 = sphi 0, %s109
      %s110 = sphi 0, %s107
      %s111 = sphi 0, %s110
      %s127 = sphi 0, %s111
    $region4: #{framewise_predictor_forward.1} parent=1 // loop_header_branch
      %16 = sbr.rel (%p14) target = $region8
    $region5: #{framewise_predictor_forward.1} parent=1 // loop_body
      %s18 = ssub.s32 %s13, 1
      %s19 = ssub.s32 %s13, 2
      %s26 = sadd.s32 1, %s21
      %p27 = scmp.ge.s32.totalorder %s26, 1
      %s28 = scalar_select %p27, 0, %s26
      %s29 = sadd.s32 1, %s20
      %s30 = scalar_select %p27, %s29, %s20
      %p31 = scmp.ge.s32.totalorder %s30, 2
      %s32 = scalar_select %p31, 0, %s30
      %s33 = ssub.s32 %s20, %s32
      %s34 = ssub.s32 %s21, %s28
      %s35 = sor.u32 %s33, %s34
      %p36 = scmp.eq.s32.totalorder %s35, 0
      %s38 = sadd.s32 %s37, 1
      %s39 = scalar_select %p36, %s37, %s38
      %p42 = pneg %p36
      %p43 = scmp.eq.s32.totalorder %s13, 1
      %p44 = por %p42, %p43
      %p45 = scmp.ne.s32.totalorder %s37, %s40
      %p46 = scmp.eq.s32.totalorder %s13, 0
      %p47 = por %p45, %p46
      %p48 = scmp.ne.s32.totalorder %s37, %s40
      %p49 = scmp.eq.s32.totalorder %s18, 1
      %p50 = por %p48, %p49
      %p51 = scmp.ne.s32.totalorder %s40, %s41
      %p52 = scmp.eq.s32.totalorder %s18, 0
      %p53 = por %p51, %p52
      %p54 = scmp.ne.s32.totalorder %s40, %s41
      %p55 = scmp.eq.s32.totalorder %s19, 1
      %p56 = por %p54, %p55
      %p58 = scmp.ne.s32.totalorder %s41, %s57
      %p59 = scmp.eq.s32.totalorder %s19, 0
      %p60 = por %p58, %p59
      %s62 = sadd.s32 %s61, 1
      %p65 = scmp.eq.s32.totalorder %s13, 1
      %p66 = scmp.ne.s32.totalorder %s61, %s63
      %p67 = scmp.eq.s32.totalorder %s13, 0
      %p68 = por %p66, %p67
      %p69 = scmp.ne.s32.totalorder %s61, %s63
      %p70 = scmp.eq.s32.totalorder %s18, 1
      %p71 = por %p69, %p70
      %p72 = scmp.ne.s32.totalorder %s63, %s64
      %p73 = scmp.eq.s32.totalorder %s18, 0
      %p74 = por %p72, %p73
      %p75 = scmp.ne.s32.totalorder %s63, %s64
      %p76 = scmp.eq.s32.totalorder %s19, 1
      %p77 = por %p75, %p76
      %p79 = scmp.ne.s32.totalorder %s64, %s78
      %p80 = scmp.eq.s32.totalorder %s19, 0
      %p81 = por %p79, %p80
      %s83 = sadd.s32 %s82, 1
      %p86 = scmp.eq.s32.totalorder %s13, 1
      %p87 = scmp.ne.s32.totalorder %s82, %s84
      %p88 = scmp.eq.s32.totalorder %s13, 0
      %p89 = por %p87, %p88
      %p90 = scmp.ne.s32.totalorder %s82, %s84
      %p91 = scmp.eq.s32.totalorder %s18, 1
      %p92 = por %p90, %p91
      %p93 = scmp.ne.s32.totalorder %s84, %s85
      %p94 = scmp.eq.s32.totalorder %s18, 0
      %p95 = por %p93, %p94
      %p96 = scmp.ne.s32.totalorder %s84, %s85
      %p97 = scmp.eq.s32.totalorder %s19, 1
      %p98 = por %p96, %p97
      %p100 = scmp.ne.s32.totalorder %s85, %s99
      %p101 = scmp.eq.s32.totalorder %s19, 0
      %p102 = por %p100, %p101
      %s103 = ssub.s32 %s20, %s32
      %s104 = ssub.s32 %s21, %s28
      %s105 = sor.u32 %s103, %s104
      %p106 = scmp.eq.s32.totalorder %s105, 0
      %s108 = sadd.s32 %s107, 1
      %s109 = scalar_select %p106, %s107, %s108
      %p112 = pneg %p106
      %p113 = scmp.eq.s32.totalorder %s13, 1
      %p114 = por %p112, %p113
      %p115 = scmp.ne.s32.totalorder %s107, %s110
      %p116 = scmp.eq.s32.totalorder %s13, 0
      %p117 = por %p115, %p116
      %p118 = scmp.ne.s32.totalorder %s107, %s110
      %p119 = scmp.eq.s32.totalorder %s18, 1
      %p120 = por %p118, %p119
      %p121 = scmp.ne.s32.totalorder %s110, %s111
      %p122 = scmp.eq.s32.totalorder %s18, 0
      %p123 = por %p121, %p122
      %p124 = scmp.ne.s32.totalorder %s110, %s111
      %p125 = scmp.eq.s32.totalorder %s19, 1
      %p126 = por %p124, %p125
      %p128 = scmp.ne.s32.totalorder %s111, %s127
      %p129 = scmp.eq.s32.totalorder %s19, 0
      %p130 = por %p128, %p129
      %p131 = scmp.le.s32.totalorder 1, %s13
      %p132 = scmp.lt.s32.totalorder %s13, 3
      %p133 = pnand %p131, %p132
      %p134 = pneg %p133
      // Predicated region
      $region9: #{framewise_predictor_forward.1} parent=5 // pred_check
        _
      $region10: #{framewise_predictor_forward.1} parent=5 // pred_check_branch
        %136 = sbr.rel (%p133) target = $region12
      $region11: #{framewise_predictor_forward.1} parent=5 // pred_region
        %s137 = ssub.s32 %s13, 1
        // Predicated region
        $region13: #{framewise_predictor_forward.1} parent=11 // pred_check
          %p138 = pneg %p74
        $region14: #{framewise_predictor_forward.1} parent=11 // pred_check_branch
          %140 = sbr.rel (%p138) target = $region16
        $region15: #{framewise_predictor_forward.1} parent=11 // pred_region
          %s142 = ssub.s32 768, 768
          %143 = vsyncadd [#allocation4], %s142
          %s144 = sshll.u32 [#allocation3], 4
          %s145 = int_to_ptr.vmem [resolvable:$true] %s144
          %150 = dma.hbm_to_vmem [thread:$0]  %s1, 768, %s145, [#allocation4], 64, 64, 4
        $region16: #{framewise_predictor_forward.1} parent=11 // pred_fallthru
          _
        // Predicated region
        $region17: #{framewise_predictor_forward.1} parent=11 // pred_check
          %p151 = pneg %p95
        $region18: #{framewise_predictor_forward.1} parent=11 // pred_check_branch
          %153 = sbr.rel (%p151) target = $region20
        $region19: #{framewise_predictor_forward.1} parent=11 // pred_region
          _
        $region20: #{framewise_predictor_forward.1} parent=11 // pred_fallthru
          _
      $region12: #{framewise_predictor_forward.1} parent=5 // pred_fallthru
        _
      %p154 = scmp.lt.s32.totalorder %s13, 2
      // Predicated region
      $region21: #{framewise_predictor_forward.1} parent=5 // pred_check
        %p155 = pneg %p154
      $region22: #{framewise_predictor_forward.1} parent=5 // pred_check_branch
        %157 = sbr.rel (%p155) target = $region24
      $region23: #{framewise_predictor_forward.1} parent=5 // pred_region
        // Predicated region
        $region25: #{framewise_predictor_forward.1} parent=23 // pred_check
          %p158 = pneg %p47
        $region26: #{framewise_predictor_forward.1} parent=23 // pred_check_branch
          %160 = sbr.rel (%p158) target = $region28
        $region27: #{framewise_predictor_forward.1} parent=23 // pred_region
          %p161 = scmp.lt.s32.totalorder %s20, 1
          %s162 = scalar_select %p161, %s20, 1
          %p163 = scmp.lt.s32.totalorder %s21, 0
          %s164 = scalar_select %p163, %s21, 0
          %s165 = sadd.s32 %s164, %s162
          %s166 = smul.addr %s165, 4
          %s167 = scalar_lea.vmem %s0, %s166
        $region28: #{framewise_predictor_forward.1} parent=23 // pred_fallthru
          _
      $region24: #{framewise_predictor_forward.1} parent=5 // pred_fallthru
        _
      %p168 = scmp.le.s32.totalorder 1, %s13
      %p169 = scmp.lt.s32.totalorder %s13, 3
      %p170 = pnand %p168, %p169
      %p171 = pneg %p170
      // Predicated region
      $region29: #{framewise_predictor_forward.1} parent=5 // pred_check
        _
      $region30: #{framewise_predictor_forward.1} parent=5 // pred_check_branch
        %173 = sbr.rel (%p170) target = $region32
      $region31: #{framewise_predictor_forward.1} parent=5 // pred_region
        %s174 = ssub.s32 %s13, 1
        // Predicated region
        $region33: #{framewise_predictor_forward.1} parent=31 // pred_check
          %p175 = pneg %p74
        $region34: #{framewise_predictor_forward.1} parent=31 // pred_check_branch
          %177 = sbr.rel (%p175) target = $region36
        $region35: #{framewise_predictor_forward.1} parent=31 // pred_region
          %178 = dma.done [#allocation4], 768
        $region36: #{framewise_predictor_forward.1} parent=31 // pred_fallthru
          _
        %p179 = scmp.lt.s32.totalorder %s22, 1
        %s180 = scalar_select %p179, %s22, 1
        %p181 = scmp.lt.s32.totalorder %s23, 0
        %s182 = scalar_select %p181, %s23, 0
        %s183 = sadd.s32 %s182, %s180
        %s184 = smul.addr %s183, 4
        %s185 = scalar_lea.vmem %s0, %s184
        %p186 = pneg %p53
        %p187 = pneg %p50
        %p188 = pneg %p74
        %p189 = pneg %p71
        %p190 = pneg %p95
        %p191 = pneg %p92
        %p192 = pneg %p123
        %p193 = pneg %p120
        %s194 = sand.u32 %s110, 1
        %s195 = scalar_lea.sflag [#allocation5], %s194
        %s196 = sand.u32 %s110, 1
        %s197 = smul.addr %s196, 8
        %s198 = scalar_lea.vmem [#allocation6], %s197
        %p199 = scmp.lt.s32.totalorder %s22, 1
        %s200 = scalar_select %p199, %s22, 1
        %p201 = scmp.lt.s32.totalorder %s23, 0
        %s202 = scalar_select %p201, %s23, 0
        %s203 = sadd.s32 %s202, %s200
        %s204 = smul.addr %s203, 4
        %s205 = scalar_lea.vmem %s0, %s204
        %v207 = vld [vmem:[%s205] sm:$0xf]
        %vm208 = vcmask 257024
        %209 = vst.msk [vmem:[#allocation2] sm:$0xf] %vm208, %v207
        %v210 = vld [vmem:[%s205] sm:$0xf]
        %v212 = vunpack.c.l.b16 %v210
        %v213 = vpack.c.b16 %v212, %v212
        %v215 = vshrl.u32 %v213, 16
        %v217 = vshll.u32 %v213, 16
        %v219 = vrot.slane %v217, 1
        %v220 = vor.u32 %v215, %v219
        %vm222 = vcmask 1043456
        %vm223 = vsmask.f32 3328
        %vm224 = vmand %vm222, %vm223
        %v225 = vsel %vm224, %v220, 0
        %v227 = vunpack.c.l.b16 %v225
        %v228 = vpack.c.b16 %v227, %v227
        %229 = vrot.lane.b32.xlu0 %v228, 32
        %v230 = vpop.permute.xlu0 %229
        %vm232 = vcmask 519424
        %233 = vst.msk [vmem:[#allocation2] sm:$0xf] %vm232, %v230
        %v234 = vld [vmem:[%s205] sm:$0xe]
        %v236 = vunpack.c.l.b16 %v234
        %v237 = vpack.c.b16 %v236, %v236
        %v238 = vrot.slane %v237, 1
        %vm239 = vcmask 1042432
        %v242 = vsel %vm239, %v238, 0
        %v244 = vunpack.c.l.b16 %v242
        %v245 = vpack.c.b16 %v244, %v244
        %246 = vrot.lane.b32.xlu0 %v245, 64
        %v247 = vpop.permute.xlu0 %246
        %vm249 = vcmask 781824
        %250 = vst.msk [vmem:[#allocation2] sm:$0xf] %vm249, %v247
        %v251 = vld [vmem:[#allocation2] sm:$0xf]
        %v252 = vld [vmem:[#allocation3] sm:$0xf]
        %v253 = vld [vmem:[#allocation3 + $0x4] sm:$0xf]
        %v254 = vld [vmem:[#allocation3 + $0x8] sm:$0xf]
        %v255 = vld [vmem:[#allocation3 + $0xc] sm:$0xf]
        %v256 = vld [vmem:[#allocation3 + $0x10] sm:$0xf]
        %v257 = vld [vmem:[#allocation3 + $0x14] sm:$0xf]
        %v258 = vld [vmem:[#allocation3 + $0x18] sm:$0xf]
        %v259 = vld [vmem:[#allocation3 + $0x1c] sm:$0xf]
        %v260 = vld [vmem:[#allocation3 + $0x20] sm:$0xf]
        %v261 = vld [vmem:[#allocation3 + $0x24] sm:$0xf]
        %v262 = vld [vmem:[#allocation3 + $0x28] sm:$0xf]
        %v263 = vld [vmem:[#allocation3 + $0x2c] sm:$0xf]
        %v264 = vld [vmem:[%s2] sm:$0x1]
        %v266 = vlaneseq
        %v267 = vshrl.u32 %v266, 7
        %v268 = vsub.s32 0, %v267
        %v269 = vrot.slane %v264, %v268
        %v283 = vunpack.c.l.b16 %v252
        %v284 = vunpack.c.l.b16 %v253
        %v285 = vunpack.c.l.b16 %v254
        %v286 = vunpack.c.l.b16 %v255
        %v287 = vunpack.c.l.b16 %v256
        %v288 = vunpack.c.l.b16 %v257
        %v289 = vunpack.c.l.b16 %v258
        %v290 = vunpack.c.l.b16 %v259
        %v291 = vunpack.c.l.b16 %v260
        %v292 = vunpack.c.l.b16 %v261
        %v293 = vunpack.c.l.b16 %v262
        %v294 = vunpack.c.l.b16 %v263
        %v295 = vpack.c.b16 %v284, %v283
        %v296 = vpack.c.b16 %v286, %v285
        %v297 = vpack.c.b16 %v288, %v287
        %v298 = vpack.c.b16 %v290, %v289
        %v299 = vpack.c.b16 %v292, %v291
        %v300 = vpack.c.b16 %v294, %v293
        %vm307 = vcmask 785408
        %v309 = vsel %vm307, %v251, 0
        %311 = vmatprep.subr.bf16.mxu0 0
        %312 = vmatpush1.bf16.msra.mxu0 0
        %313 = vmatprep.subr.bf16.mxu0 0
        %314 = vmatpush1.bf16.msra.mxu0 0
        %315 = vmatprep.subr.bf16.mxu0 0
        %316 = vmatpush1.bf16.msra.mxu0 %v300
        %317 = vmatprep.subr.bf16.mxu0 0
        %318 = vmatpush1.bf16.msra.mxu0 %v299
        %319 = vmatprep.subr.bf16.mxu0 0
        %320 = vmatpush1.bf16.msra.mxu0 %v298
        %321 = vmatprep.subr.bf16.mxu0 0
        %322 = vmatpush1.bf16.msra.mxu0 %v297
        %323 = vmatprep.subr.bf16.mxu0 0
        %324 = vmatpush1.bf16.msra.mxu0 %v296
        %325 = vmatprep.subr.bf16.mxu0 0
        %326 = vmatpush1.bf16.msra.mxu0 %v295
        %327 = vmatprep.subr.bf16.mxu0 0
        %328 = vmatpush2.bf16.msra.mxu0 0
        %329 = vmatprep.subr.bf16.mxu0 0
        %330 = vmatpush2.bf16.msra.mxu0 0
        %331 = vmatprep.subr.bf16.mxu0 0
        %332 = vmatpush2.bf16.msra.mxu0 0
        %333 = vmatprep.subr.bf16.mxu0 0
        %334 = vmatpush2.bf16.msra.mxu0 0
        %335 = vmatprep.subr.bf16.mxu0 0
        %336 = vmatpush2.bf16.msra.mxu0 0
        %337 = vmatprep.subr.bf16.mxu0 0
        %338 = vmatpush2.bf16.msra.mxu0 0
        %339 = vmatprep.subr.bf16.mxu0 0
        %340 = vmatpush2.bf16.msra.mxu0 0
        %341 = vmatprep.subr.bf16.mxu0 0
        %342 = vmatpush2.bf16.msra.mxu0 0
        %343 = vmatprep.mubr.bf16.mxu0 0
        %344 = vmatmul.mubr.bf16.gmra.mxu0 %v309
        %v345 = vpop.f32.mrf.mxu0
        %v346 = vadd.f32 %v269, %v345
        %v347 = vpop.f32.mrf.mxu0
        %v348 = vpop.f32.mrf.mxu0
        %v349 = vpop.f32.mrf.mxu0
        %350 = vdwg.mxu0
        %351 = vst [vmem:[%s198] sm:$0xff] %v346
        %s352 = sand.u32 %s110, 1
        %s353 = scalar_lea.sflag [#allocation5], %s352
        %s354 = sand.u32 %s110, 1
        %s355 = smul.addr %s354, 8
        %s356 = scalar_lea.vmem [#allocation6], %s355
        // Predicated region
        $region37: #{framewise_predictor_forward.1} parent=31 // pred_check
          %p357 = pneg %p120
        $region38: #{framewise_predictor_forward.1} parent=31 // pred_check_branch
          %359 = sbr.rel (%p357) target = $region40
        $region39: #{framewise_predictor_forward.1} parent=31 // pred_region
          %s361 = ssub.s32 128, 128
          %362 = vsyncadd %s353, %s361
          %s363 = sadd.s32 %s23, %s22
          %s364 = smul.addr %s363, 128
          %s365 = scalar_lea.hbm %s3, %s364
          %s367 = sshll.u32 %s356, 4
          %s368 = int_to_ptr.vmem [resolvable:$true] %s367
          %370 = dma.vmem_to_hbm [thread:$0]  %s368, 128, %s365, %s353
        $region40: #{framewise_predictor_forward.1} parent=31 // pred_fallthru
          _
      $region32: #{framewise_predictor_forward.1} parent=5 // pred_fallthru
        _
      %p371 = scmp.le.s32.totalorder 2, %s13
      // Predicated region
      $region41: #{framewise_predictor_forward.1} parent=5 // pred_check
        %p372 = pneg %p371
      $region42: #{framewise_predictor_forward.1} parent=5 // pred_check_branch
        %374 = sbr.rel (%p372) target = $region44
      $region43: #{framewise_predictor_forward.1} parent=5 // pred_region
        %s375 = ssub.s32 %s13, 2
        // Predicated region
        $region45: #{framewise_predictor_forward.1} parent=43 // pred_check
          %p376 = pneg %p126
        $region46: #{framewise_predictor_forward.1} parent=43 // pred_check_branch
          %378 = sbr.rel (%p376) target = $region48
        $region47: #{framewise_predictor_forward.1} parent=43 // pred_region
          %s379 = sand.u32 %s111, 1
          %s380 = scalar_lea.sflag [#allocation5], %s379
          %s381 = sand.u32 %s111, 1
          %s382 = smul.addr %s381, 8
          %s383 = scalar_lea.vmem [#allocation6], %s382
          %384 = dma.done %s380, 128
        $region48: #{framewise_predictor_forward.1} parent=43 // pred_fallthru
          _
      $region44: #{framewise_predictor_forward.1} parent=5 // pred_fallthru
        _
    $region6: #{framewise_predictor_forward.1} parent=1 // loop_footer
      %s17 = sadd.s32 1, %s13
    $region7: #{framewise_predictor_forward.1} parent=1 // loop_footer_branch
      %12 = sbr.rel target = $region3
    $region8: #{framewise_predictor_forward.1} parent=1 // loop_exit
      _
    %385 = vsyncpa [#allocation4], 1
    %s386 = scalar_lea.sflag [#allocation4], 1
    %387 = vsyncpa %s386, 1
    %388 = vsyncpa [#allocation5], 1
    %s389 = scalar_lea.sflag [#allocation5], 1
    %390 = vsyncpa %s389, 1

</llo_original>
